<compile_context>
chip_gen: v7x
topology: tpu7x:2x2x1
jax: 0.10.0
libtpu: 0.0.40
codegen_flags: <defaults>
</compile_context>

<pallas_src>
import functools

import jax
import jax.numpy as jnp
from jax.experimental import pallas as pl
from jax.experimental.pallas import tpu as pltpu


# ---------------------------------------------------------------------------
# Linear kernel: y = x @ w + b, tiled over rows (M).
# ---------------------------------------------------------------------------
def _linear_kernel(x_ref, w_ref, b_ref, o_ref):
    acc = jnp.dot(x_ref[...].astype(jnp.bfloat16),
                  w_ref[...].astype(jnp.bfloat16),
                  preferred_element_type=jnp.float32)
    o_ref[...] = (acc + b_ref[...].astype(jnp.float32)).astype(o_ref.dtype)


def linear_pallas(x, w, b):
    """y = x @ w + b, x:(M,K) w:(K,N) b:(N,)."""
    M, K = x.shape
    N = w.shape[1]
    tm = M
    for cand in (512, 256, 128):
        if M % cand == 0:
            tm = cand
            break
    return pl.pallas_call(
        _linear_kernel,
        out_shape=jax.ShapeDtypeStruct((M, N), x.dtype),
        grid=(M // tm,),
        in_specs=[
            pl.BlockSpec((tm, K), lambda i: (i, 0)),
            pl.BlockSpec((K, N), lambda i: (0, 0)),
            pl.BlockSpec((1, N), lambda i: (0, 0)),
        ],
        out_specs=pl.BlockSpec((tm, N), lambda i: (i, 0)),
        compiler_params=pltpu.CompilerParams(dimension_semantics=("parallel",)),
    )(x, w, b.reshape(1, N))


# ---------------------------------------------------------------------------
# Attention core kernel: one batch element per grid step, heads unrolled inside.
# ---------------------------------------------------------------------------
def _attn_kernel(qkv_ref, rhp_ref, rwf_ref, e_ref, o_ref, rel_ref, *,
                 scale, H, W, num_heads, head_dim):
    S = H * W
    C = num_heads * head_dim

    rhp = rhp_ref[...]        # (hd, H*H)   bf16, lane-dense rel_h table
    rwf = rwf_ref[...]        # (W*hd, W)   bf16, rel_w table (K-major for the masked matmul)
    e_mat = e_ref[...]        # (H+W, S)    bf16, fused 0/1 expansion matrix

    # Row-class mask for the rel_w block-diagonal left operand; depends only on
    # (s % W, lane-block index) so it is hoisted out of the head loop.
    col_blk = jax.lax.broadcasted_iota(jnp.int32, (S, W * head_dim), 1) // head_dim
    row_mod = jax.lax.broadcasted_iota(jnp.int32, (S, W * head_dim), 0) % W
    w_mask = col_blk == row_mod

    qkv = qkv_ref[0]          # (S, 3*C) f32; last-dim layout is [q|k|v] x heads x hd

    for n in range(num_heads):
        q = qkv[:, n * head_dim:(n + 1) * head_dim]                       # (S, hd)
        k = qkv[:, C + n * head_dim:C + (n + 1) * head_dim]               # (S, hd)
        v = qkv[:, 2 * C + n * head_dim:2 * C + (n + 1) * head_dim]       # (S, hd)
        q_bf = q.astype(jnp.bfloat16)

        # attn = (q * scale) @ k^T   (bf16 MXU operands, f32 accumulate)
        attn = jax.lax.dot_general(
            (q * scale).astype(jnp.bfloat16), k.astype(jnp.bfloat16),
            dimension_numbers=(((1,), (1,)), ((), ())),
            preferred_element_type=jnp.float32)                           # (S, S)

        # rel_h: contiguous per-spatial-row slices, written straight into scratch.
        for h in range(H):
            q_rows = q_bf[h * W:(h + 1) * W, :]                           # (W, hd)
            rel_ref[h * W:(h + 1) * W, 0:H] = jnp.dot(
                q_rows, rhp[:, h * H:(h + 1) * H],
                preferred_element_type=jnp.float32)                       # (W, H)

        # rel_w: rows of class (s % W) are strided, so use one masked
        # block-diagonal matmul instead of strided scatter-stores:
        #   QW[s, w*hd + c] = q[s, c] * [s % W == w];  rel_w = QW @ RwFlat
        q_tiled = jnp.concatenate([q] * W, axis=1)                        # (S, W*hd) f32
        qw = jnp.where(w_mask, q_tiled, 0.0).astype(jnp.bfloat16)
        rel_ref[:, H:H + W] = jnp.dot(qw, rwf,
                                      preferred_element_type=jnp.float32)  # (S, W)

        # Fused expansion of both decomposed biases: attn += [rel_h | rel_w] @ E
        attn = attn + jnp.dot(rel_ref[...].astype(jnp.bfloat16), e_mat,
                              preferred_element_type=jnp.float32)

        # softmax along keys (f32 VPU/EUP; divide moved to EUP via approx reciprocal)
        attn = attn - jnp.max(attn, axis=-1, keepdims=True)
        p = jnp.exp(attn)
        p = p * pl.reciprocal(jnp.sum(p, axis=-1, keepdims=True), approx=True)

        # per-head result written into its channel slice of the (S, C) output slab
        o_ref[0, :, n * head_dim:(n + 1) * head_dim] = jnp.dot(
            p.astype(jnp.bfloat16), v.astype(jnp.bfloat16),
            preferred_element_type=jnp.float32).astype(o_ref.dtype)


def attention_core_pallas(qkv, RhP, RwFlat, E, scale, H, W, num_heads, head_dim):
    """qkv:(B,S,3C); RhP:(hd,H*H); RwFlat:(W*hd,W); E:(H+W,S) -> (B,S,C)."""
    B, S, threeC = qkv.shape
    C = num_heads * head_dim
    kernel = functools.partial(_attn_kernel, scale=scale, H=H, W=W,
                               num_heads=num_heads, head_dim=head_dim)
    return pl.pallas_call(
        kernel,
        out_shape=jax.ShapeDtypeStruct((B, S, C), qkv.dtype),
        grid=(B,),
        in_specs=[
            pl.BlockSpec((1, S, threeC), lambda b: (b, 0, 0)),
            pl.BlockSpec((head_dim, H * H), lambda b: (0, 0)),
            pl.BlockSpec((W * head_dim, W), lambda b: (0, 0)),
            pl.BlockSpec((H + W, S), lambda b: (0, 0)),
        ],
        out_specs=pl.BlockSpec((1, S, C), lambda b: (b, 0, 0)),
        scratch_shapes=[pltpu.VMEM((S, H + W), jnp.float32)],
        compiler_params=pltpu.CompilerParams(dimension_semantics=("parallel",)),
    )(qkv, RhP, RwFlat, E)


# ---------------------------------------------------------------------------
# Host-side glue (rel-pos table gather / repacking, reshapes)
# ---------------------------------------------------------------------------
def get_rel_pos_table(q_size, k_size, rel_pos):
    # rel_pos has length 2*max(q,k)-1 here, so no interpolation is required.
    # TODO(synk): F.interpolate 'linear' resize path (rel_pos length mismatch) is omitted.
    q_coords = jnp.arange(q_size)[:, None] * max(k_size / q_size, 1.0)
    k_coords = jnp.arange(k_size)[None, :] * max(q_size / k_size, 1.0)
    rel = q_coords - k_coords + (k_size - 1) * max(q_size / k_size, 1.0)
    return rel_pos[rel.astype(jnp.int32)]       # (q_size, k_size, hd)


def attention_forward(x, params, num_heads):
    B, H, W, C = x.shape
    hd = C // num_heads
    S = H * W
    scale = hd ** (-0.5)

    # qkv projection; keep (B, S, 3C) layout — no head/qkv transpose materialized.
    qkv = linear_pallas(x.reshape(B * S, C), params["qkv_w"], params["qkv_b"])
    qkv = qkv.reshape(B, S, 3 * C)

    # Relative-position tables, repacked lane-dense for the kernel.
    Rh = get_rel_pos_table(H, H, params["rel_pos_h"])                    # (H, H, hd)
    Rw = get_rel_pos_table(W, W, params["rel_pos_w"])                    # (W, W, hd)
    RhP = jnp.transpose(Rh, (2, 0, 1)).reshape(hd, H * H).astype(jnp.bfloat16)
    RwFlat = jnp.transpose(Rw, (0, 2, 1)).reshape(W * hd, W).astype(jnp.bfloat16)
    Eh = (jnp.arange(S)[None, :] // W == jnp.arange(H)[:, None])
    Ew = (jnp.arange(S)[None, :] % W == jnp.arange(W)[:, None])
    E = jnp.concatenate([Eh, Ew], axis=0).astype(jnp.bfloat16)           # (H+W, S)

    o = attention_core_pallas(qkv, RhP, RwFlat, E, scale, H, W, num_heads, hd)  # (B,S,C)

    out = linear_pallas(o.reshape(B * S, C), params["proj_w"], params["proj_b"])
    return out.reshape(B, H, W, C)


def reference_forward(x, params, num_heads):
    """Pure-JAX (f32) mirror of the PyTorch forward, for verification."""
    B, H, W, C = x.shape
    hd = C // num_heads
    scale = hd ** (-0.5)
    qkv = x.reshape(B * H * W, C) @ params["qkv_w"] + params["qkv_b"]
    qkv = qkv.reshape(B, H * W, 3, num_heads, hd).transpose(2, 0, 3, 1, 4)
    qkv = qkv.reshape(3, B * num_heads, H * W, hd)
    q, k, v = qkv[0], qkv[1], qkv[2]
    attn = (q * scale) @ jnp.swapaxes(k, -2, -1)
    Rh = get_rel_pos_table(H, H, params["rel_pos_h"])
    Rw = get_rel_pos_table(W, W, params["rel_pos_w"])
    r_q = q.reshape(B * num_heads, H, W, hd)
    rel_h = jnp.einsum("bhwc,hkc->bhwk", r_q, Rh)
    rel_w = jnp.einsum("bhwc,wkc->bhwk", r_q, Rw)
    attn = (attn.reshape(B * num_heads, H, W, H, W)
            + rel_h[:, :, :, :, None] + rel_w[:, :, :, None, :]
            ).reshape(B * num_heads, H * W, H * W)
    attn = jax.nn.softmax(attn, axis=-1)
    o = attn @ v
    o = o.reshape(B, num_heads, H, W, hd).transpose(0, 2, 3, 1, 4).reshape(B * H * W, C)
    return (o @ params["proj_w"] + params["proj_b"]).reshape(B, H, W, C)


# ---------------------------------------------------------------------------
# Main
# ---------------------------------------------------------------------------
if __name__ == "__main__":
    B, H, W, dim, num_heads = 2, 8, 8, 32, 2     # use_rel_pos=True, input_size=(8, 8)
    hd = dim // num_heads

    key = jax.random.PRNGKey(0)
    ks = jax.random.split(key, 7)
    params = {
        "qkv_w": 0.05 * jax.random.normal(ks[0], (dim, 3 * dim), jnp.float32),
        "qkv_b": 0.05 * jax.random.normal(ks[1], (3 * dim,), jnp.float32),
        "proj_w": 0.05 * jax.random.normal(ks[2], (dim, dim), jnp.float32),
        "proj_b": 0.05 * jax.random.normal(ks[3], (dim,), jnp.float32),
        "rel_pos_h": 0.05 * jax.random.normal(ks[4], (2 * H - 1, hd), jnp.float32),
        "rel_pos_w": 0.05 * jax.random.normal(ks[5], (2 * W - 1, hd), jnp.float32),
    }
    x = jax.random.normal(ks[6], (B, H, W, dim), jnp.float32)

    out = jax.block_until_ready(attention_forward(x, params, num_heads))
    ref = jax.block_until_ready(reference_forward(x, params, num_heads))

    assert out.shape == (B, H, W, dim)
    max_err = float(jnp.max(jnp.abs(out - ref)))
    assert jnp.allclose(out, ref, atol=2e-2, rtol=2e-2), max_err

    print("KERNEL_OK")
</pallas_src>

<mosaic_0001>
module attributes {stable_mosaic.version = 11 : i64} {
  func.func @_linear_kernel(%arg0: i32, %arg1: memref<128x32xf32, #tpu.memory_space<vmem>>, %arg2: memref<32x96xf32, #tpu.memory_space<vmem>>, %arg3: memref<1x96xf32, #tpu.memory_space<vmem>>, %arg4: memref<128x96xf32, #tpu.memory_space<vmem>>) attributes {dimension_semantics = [#tpu.dimension_semantics<parallel>], iteration_bounds = array<i64: 1>, scalar_prefetch = 0 : i64, scratch_operands = 0 : i64, tpu.core_type = #tpu.core_type<tc>, window_params = [{transform_indices = @transform_0, window_bounds = array<i64: 128, 32>}, {pipeline_mode = #tpu.pipeline_mode<synchronous>, transform_indices = @transform_1, window_bounds = array<i64: 32, 96>}, {pipeline_mode = #tpu.pipeline_mode<synchronous>, transform_indices = @transform_2, window_bounds = array<i64: 1, 96>}, {transform_indices = @transform_3, window_bounds = array<i64: 128, 96>}]} {
    %c0 = arith.constant 0 : index
    %c0_0 = arith.constant 0 : index
    %0 = vector.load %arg1[%c0, %c0_0] : memref<128x32xf32, #tpu.memory_space<vmem>>, vector<128x32xf32>
    %1 = arith.truncf %0 : vector<128x32xf32> to vector<128x32xbf16>
    %c0_1 = arith.constant 0 : index
    %c0_2 = arith.constant 0 : index
    %2 = vector.load %arg2[%c0_1, %c0_2] : memref<32x96xf32, #tpu.memory_space<vmem>>, vector<32x96xf32>
    %3 = arith.truncf %2 : vector<32x96xf32> to vector<32x96xbf16>
    %cst = arith.constant dense<0.000000e+00> : vector<128x96xf32>
    %4 = tpu.matmul %1, %3, %cst {dimension_numbers = #tpu.dot_dimension_numbers<[1], [0], [0], [1], [0, 0, 1, 1], [], []>} : vector<128x32xbf16>, vector<32x96xbf16>, vector<128x96xf32> -> vector<128x96xf32>
    %c0_3 = arith.constant 0 : index
    %c0_4 = arith.constant 0 : index
    %5 = vector.load %arg3[%c0_3, %c0_4] : memref<1x96xf32, #tpu.memory_space<vmem>>, vector<1x96xf32>
    %6 = vector.broadcast %5 : vector<1x96xf32> to vector<128x96xf32>
    %7 = arith.addf %4, %6 : vector<128x96xf32>
    %c0_5 = arith.constant 0 : index
    %c0_6 = arith.constant 0 : index
    %8 = vector.load %arg4[%c0_5, %c0_6] : memref<128x96xf32, #tpu.memory_space<vmem>>, vector<128x96xf32>
    tpu.vector_store %arg4[%c0_5, %c0_6], %7 {strides = array<i32>} : memref<128x96xf32, #tpu.memory_space<vmem>>, vector<128x96xf32>,
    return
  }
  func.func @transform_0(%arg0: i32) -> (i32, i32) {
    %c0_i32 = arith.constant 0 : i32
    %c0_i32_0 = arith.constant 0 : i32
    return %arg0, %c0_i32 : i32, i32
  }
  func.func @transform_1(%arg0: i32) -> (i32, i32) {
    %c0_i32 = arith.constant 0 : i32
    %c0_i32_0 = arith.constant 0 : i32
    %c0_i32_1 = arith.constant 0 : i32
    return %c0_i32, %c0_i32_0 : i32, i32
  }
  func.func @transform_2(%arg0: i32) -> (i32, i32) {
    %c0_i32 = arith.constant 0 : i32
    %c0_i32_0 = arith.constant 0 : i32
    %c0_i32_1 = arith.constant 0 : i32
    return %c0_i32, %c0_i32_0 : i32, i32
  }
  func.func @transform_3(%arg0: i32) -> (i32, i32) {
    %c0_i32 = arith.constant 0 : i32
    %c0_i32_0 = arith.constant 0 : i32
    return %arg0, %c0_i32 : i32, i32
  }
}

</mosaic_0001>

<llo_original>
// kernel: tpu_custom_call.1
$region0: #{tpu_custom_call.1}
  #allocation0 [shape = 'u32[]', space=smem, size = 0x4, offset = 0x4, fixed_abs, tag = 'smem constant byte address 0x4 - core index']
  #allocation1 [shape = 'u32[144,128]{1,0:T(1,128)}', space=vmem, size = 0x12000, scoped, tag = 'internal scratch']
  %s0 = inlined_call_operand.vmem [shape: f32[128,32], index: 0, kind: input, shape index: {}]
  %s1 = inlined_call_operand.vmem [shape: f32[32,96], index: 1, kind: input, shape index: {}]
  %s2 = inlined_call_operand.vmem [shape: f32[1,96], index: 2, kind: input, shape index: {}]
  %s3 = inlined_call_operand.vmem [shape: f32[128,96], index: 3, kind: output, shape index: {}]
  %s4 = sld [smem:[#allocation0]]
  $region22: #{tpu_custom_call.1} parent=0
    _
  %s6 = ssub.s32 1, %s4
  %s7 = scalar_select 0, %s6, %s4
  // Predicated region
  $region2: #{tpu_custom_call.1} parent=0 // pred_check
    _
  $region3: #{tpu_custom_call.1} parent=0 // pred_check_branch
    %9 = sbr.rel (0) target = $region5
  $region4: #{tpu_custom_call.1} parent=0 // pred_region
    _
  $region5: #{tpu_custom_call.1} parent=0 // pred_fallthru
    _
  // Predicated region
  $region6: #{tpu_custom_call.1} parent=0 // pred_check
    _
  $region7: #{tpu_custom_call.1} parent=0 // pred_check_branch
    %11 = sbr.rel (0) target = $region9
  $region8: #{tpu_custom_call.1} parent=0 // pred_region
    _
  $region9: #{tpu_custom_call.1} parent=0 // pred_fallthru
    _
  // Predicated region
  $region10: #{tpu_custom_call.1} parent=0 // pred_check
    _
  $region11: #{tpu_custom_call.1} parent=0 // pred_check_branch
    %13 = sbr.rel (0) target = $region13
  $region12: #{tpu_custom_call.1} parent=0 // pred_region
    _
  $region13: #{tpu_custom_call.1} parent=0 // pred_fallthru
    _
  %v15 = vld [vmem:[%s0] sm:$0xff]
  %v16 = vld [vmem:[%s0 + $0x8] sm:$0xff]
  %v17 = vld [vmem:[%s0 + $0x10] sm:$0xff]
  %v18 = vld [vmem:[%s0 + $0x18] sm:$0xff]
  %v19 = vld [vmem:[%s0 + $0x20] sm:$0xff]
  %v20 = vld [vmem:[%s0 + $0x28] sm:$0xff]
  %v21 = vld [vmem:[%s0 + $0x30] sm:$0xff]
  %v22 = vld [vmem:[%s0 + $0x38] sm:$0xff]
  %v23 = vld [vmem:[%s0 + $0x40] sm:$0xff]
  %v24 = vld [vmem:[%s0 + $0x48] sm:$0xff]
  %v25 = vld [vmem:[%s0 + $0x50] sm:$0xff]
  %v26 = vld [vmem:[%s0 + $0x58] sm:$0xff]
  %v27 = vld [vmem:[%s0 + $0x60] sm:$0xff]
  %v28 = vld [vmem:[%s0 + $0x68] sm:$0xff]
  %v29 = vld [vmem:[%s0 + $0x70] sm:$0xff]
  %v30 = vld [vmem:[%s0 + $0x78] sm:$0xff]
  %v31 = vpack.c.bf16 %v16, %v15
  %v32 = vpack.c.bf16 %v18, %v17
  %v33 = vpack.c.bf16 %v20, %v19
  %v34 = vpack.c.bf16 %v22, %v21
  %v35 = vpack.c.bf16 %v24, %v23
  %v36 = vpack.c.bf16 %v26, %v25
  %v37 = vpack.c.bf16 %v28, %v27
  %v38 = vpack.c.bf16 %v30, %v29
  %v39 = vld [vmem:[%s1] sm:$0xff]
  %v40 = vld [vmem:[%s1 + $0x8] sm:$0xff]
  %v41 = vld [vmem:[%s1 + $0x10] sm:$0xff]
  %v42 = vld [vmem:[%s1 + $0x18] sm:$0xff]
  %v43 = vpack.c.bf16 %v40, %v39
  %v44 = vpack.c.bf16 %v42, %v41
  %v45 = vld [vmem:[%s2] sm:$0x1]
  %v47 = vlaneseq
  %v48 = vshrl.u32 %v47, 7
  %v49 = vsub.s32 0, %v48
  %v50 = vrot.slane %v45, %v49
  %vm52 = vcmask 261120
  %v54 = vsel %vm52, %v31, 0
  %v57 = vsel %vm52, %v32, 0
  %v60 = vsel %vm52, %v33, 0
  %v63 = vsel %vm52, %v34, 0
  %v66 = vsel %vm52, %v35, 0
  %v69 = vsel %vm52, %v36, 0
  %v72 = vsel %vm52, %v37, 0
  %v75 = vsel %vm52, %v38, 0
  %77 = vmatprep.subr.bf16.mxu0 0
  %78 = vmatpush1.bf16.msra.mxu0 %v43
  %79 = vmatprep.subr.bf16.mxu0 0
  %80 = vmatpush1.bf16.msra.mxu0 %v44
  %81 = vmatprep.subr.bf16.mxu0 0
  %82 = vmatpush1.bf16.msra.mxu0 0
  %83 = vmatprep.subr.bf16.mxu0 0
  %84 = vmatpush1.bf16.msra.mxu0 0
  %85 = vmatprep.subr.bf16.mxu0 0
  %86 = vmatpush1.bf16.msra.mxu0 0
  %87 = vmatprep.subr.bf16.mxu0 0
  %88 = vmatpush1.bf16.msra.mxu0 0
  %89 = vmatprep.subr.bf16.mxu0 0
  %90 = vmatpush1.bf16.msra.mxu0 0
  %91 = vmatprep.subr.bf16.mxu0 0
  %92 = vmatpush1.bf16.msra.mxu0 0
  %93 = vmatprep.subr.bf16.mxu0 0
  %94 = vmatpush1.bf16.msra.mxu0 0
  %95 = vmatprep.subr.bf16.mxu0 0
  %96 = vmatpush1.bf16.msra.mxu0 0
  %97 = vmatprep.subr.bf16.mxu0 0
  %98 = vmatpush1.bf16.msra.mxu0 0
  %99 = vmatprep.subr.bf16.mxu0 0
  %100 = vmatpush1.bf16.msra.mxu0 0
  %101 = vmatprep.subr.bf16.mxu0 0
  %102 = vmatpush1.bf16.msra.mxu0 0
  %103 = vmatprep.subr.bf16.mxu0 0
  %104 = vmatpush1.bf16.msra.mxu0 0
  %105 = vmatprep.subr.bf16.mxu0 0
  %106 = vmatpush1.bf16.msra.mxu0 0
  %107 = vmatprep.subr.bf16.mxu0 0
  %108 = vmatpush1.bf16.msra.mxu0 0
  %109 = vmatprep.mubr.bf16.mxu0 0
  %110 = vmatmul.mubr.bf16.gmra.mrb[0].mxu0 %v54
  %v111 = vpop.f32.mrb[0].mxu0
  %v112 = vadd.f32 %v50, %v111
  %v113 = vpop.f32.mrb[0].mxu0
  %v114 = vpop.f32.mrb[0].mxu0
  %v115 = vadd.f32 %v50, %v114
  %v116 = vpop.f32.mrb[0].mxu0
  %117 = vmatprep.mubr.bf16.mxu0 0
  %118 = vmatmul.mubr.bf16.gmra.mrb[0].mxu0 %v57
  %v119 = vpop.f32.mrb[0].mxu0
  %v120 = vadd.f32 %v50, %v119
  %v121 = vpop.f32.mrb[0].mxu0
  %v122 = vpop.f32.mrb[0].mxu0
  %v123 = vadd.f32 %v50, %v122
  %v124 = vpop.f32.mrb[0].mxu0
  %125 = vmatprep.mubr.bf16.mxu0 0
  %126 = vmatmul.mubr.bf16.gmra.mrb[0].mxu0 %v60
  %v127 = vpop.f32.mrb[0].mxu0
  %v128 = vadd.f32 %v50, %v127
  %v129 = vpop.f32.mrb[0].mxu0
  %v130 = vpop.f32.mrb[0].mxu0
  %v131 = vadd.f32 %v50, %v130
  %v132 = vpop.f32.mrb[0].mxu0
  %133 = vmatprep.mubr.bf16.mxu0 0
  %134 = vmatmul.mubr.bf16.gmra.mrb[0].mxu0 %v63
  %v135 = vpop.f32.mrb[0].mxu0
  %v136 = vadd.f32 %v50, %v135
  %v137 = vpop.f32.mrb[0].mxu0
  %v138 = vpop.f32.mrb[0].mxu0
  %v139 = vadd.f32 %v50, %v138
  %v140 = vpop.f32.mrb[0].mxu0
  %141 = vmatprep.mubr.bf16.mxu0 0
  %142 = vmatmul.mubr.bf16.gmra.mrb[0].mxu0 %v66
  %v143 = vpop.f32.mrb[0].mxu0
  %v144 = vadd.f32 %v50, %v143
  %v145 = vpop.f32.mrb[0].mxu0
  %v146 = vpop.f32.mrb[0].mxu0
  %v147 = vadd.f32 %v50, %v146
  %v148 = vpop.f32.mrb[0].mxu0
  %149 = vmatprep.mubr.bf16.mxu0 0
  %150 = vmatmul.mubr.bf16.gmra.mrb[0].mxu0 %v69
  %v151 = vpop.f32.mrb[0].mxu0
  %v152 = vadd.f32 %v50, %v151
  %v153 = vpop.f32.mrb[0].mxu0
  %v154 = vpop.f32.mrb[0].mxu0
  %v155 = vadd.f32 %v50, %v154
  %v156 = vpop.f32.mrb[0].mxu0
  %157 = vmatprep.mubr.bf16.mxu0 0
  %158 = vmatmul.mubr.bf16.gmra.mrb[0].mxu0 %v72
  %v159 = vpop.f32.mrb[0].mxu0
  %v160 = vadd.f32 %v50, %v159
  %v161 = vpop.f32.mrb[0].mxu0
  %v162 = vpop.f32.mrb[0].mxu0
  %v163 = vadd.f32 %v50, %v162
  %v164 = vpop.f32.mrb[0].mxu0
  %165 = vmatprep.mubr.bf16.mxu0 0
  %166 = vmatmul.mubr.bf16.gmra.mrb[0].mxu0 %v75
  %v167 = vpop.f32.mrb[0].mxu0
  %v168 = vadd.f32 %v50, %v167
  %v169 = vpop.f32.mrb[0].mxu0
  %v170 = vpop.f32.mrb[0].mxu0
  %v171 = vadd.f32 %v50, %v170
  %v172 = vpop.f32.mrb[0].mxu0
  %173 = vdwg.mxu0
  %vm174 = vcmask 785408
  %175 = vst.msk [vmem:[%s3] sm:$0xff] %vm174, %v112
  %176 = vst.msk [vmem:[%s3 + $0x8] sm:$0xff] %vm174, %v115
  %177 = vst.msk [vmem:[%s3 + $0x10] sm:$0xff] %vm174, %v120
  %178 = vst.msk [vmem:[%s3 + $0x18] sm:$0xff] %vm174, %v123
  %179 = vst.msk [vmem:[%s3 + $0x20] sm:$0xff] %vm174, %v128
  %180 = vst.msk [vmem:[%s3 + $0x28] sm:$0xff] %vm174, %v131
  %181 = vst.msk [vmem:[%s3 + $0x30] sm:$0xff] %vm174, %v136
  %182 = vst.msk [vmem:[%s3 + $0x38] sm:$0xff] %vm174, %v139
  %183 = vst.msk [vmem:[%s3 + $0x40] sm:$0xff] %vm174, %v144
  %184 = vst.msk [vmem:[%s3 + $0x48] sm:$0xff] %vm174, %v147
  %185 = vst.msk [vmem:[%s3 + $0x50] sm:$0xff] %vm174, %v152
  %186 = vst.msk [vmem:[%s3 + $0x58] sm:$0xff] %vm174, %v155
  %187 = vst.msk [vmem:[%s3 + $0x60] sm:$0xff] %vm174, %v160
  %188 = vst.msk [vmem:[%s3 + $0x68] sm:$0xff] %vm174, %v163
  %189 = vst.msk [vmem:[%s3 + $0x70] sm:$0xff] %vm174, %v168
  %190 = vst.msk [vmem:[%s3 + $0x78] sm:$0xff] %vm174, %v171
  // Predicated region
  $region14: #{tpu_custom_call.1} parent=0 // pred_check
    _
  $region15: #{tpu_custom_call.1} parent=0 // pred_check_branch
    %192 = sbr.rel (0) target = $region17
  $region16: #{tpu_custom_call.1} parent=0 // pred_region
    _
  $region17: #{tpu_custom_call.1} parent=0 // pred_fallthru
    _
  // Predicated region
  $region18: #{tpu_custom_call.1} parent=0 // pred_check
    _
  $region19: #{tpu_custom_call.1} parent=0 // pred_check_branch
    %194 = sbr.rel (0) target = $region21
  $region20: #{tpu_custom_call.1} parent=0 // pred_region
    _
  $region21: #{tpu_custom_call.1} parent=0 // pred_fallthru
    _

</llo_original>
